<compile_context>
chip_gen: v7x
topology: tpu7x:2x2x1
jax: 0.10.0
libtpu: 0.0.40
codegen_flags: <defaults>
</compile_context>

<pallas_src>
import jax
import jax.numpy as jnp
from jax import lax
from jax.experimental import pallas as pl
from jax.experimental.pallas import tpu as pltpu


def _round_up(x, m):
    return ((x + m - 1) // m) * m


def _make_rnn_kernel(seq_len, b_pad):
    inv_t = 1.0 / float(seq_len)  # compile-time constant (VPU multiply, no divide)
    # Full unroll for short sequences; bounded partial unroll for long ones.
    unroll = True if seq_len <= 64 else 8

    def rnn_kernel(x_ref, w_ih_ref, w_hh_ref, b_ref, w_out_ref, b_out_ref,
                   out_ref, xproj_ref):
        # (1) Hoisted input projection for ALL timesteps as one big GEMM:
        #     (T*B_pad, E_pad) @ (E_pad, H_pad) + bias  -> VMEM scratch.
        xproj_ref[...] = (
            jnp.dot(x_ref[...], w_ih_ref[...], preferred_element_type=jnp.float32)
            + b_ref[...]
        )

        # Recurrent weight loaded from VMEM once, reused every step.
        w_hh = w_hh_ref[...]
        h_pad = w_hh.shape[1]
        h0 = jnp.zeros((b_pad, h_pad), jnp.float32)  # one vreg
        s0 = jnp.zeros((b_pad, h_pad), jnp.float32)  # one vreg

        # (2) Serial recurrence over time; only h @ W_hh + tanh remains on the
        #     critical path.
        def step(t, carry):
            h, s = carry
            row = pl.multiple_of(t * b_pad, b_pad)  # sublane-aligned slice start
            x_t = xproj_ref[pl.ds(row, b_pad), :]
            h_new = jnp.tanh(
                x_t + jnp.dot(h, w_hh, preferred_element_type=jnp.float32))
            return h_new, s + h_new

        _, s = lax.fori_loop(0, seq_len, step, (h0, s0), unroll=unroll)

        # (3) Mean over time + final Linear; output is lane-dense (8, 128).
        mean_h = s * inv_t
        out_ref[...] = (
            jnp.dot(mean_h, w_out_ref[...], preferred_element_type=jnp.float32)
            + b_out_ref[...]
        ).astype(out_ref.dtype)

    return rnn_kernel


def rnn_forward(text, emb_table, w_ih, w_hh, b_ih, b_hh, w_lin, b_lin):
    """text: (seq_len, batch) int32.  Returns (batch, output_dim) float32."""
    seq_len, batch = text.shape
    emb_dim = emb_table.shape[1]
    hidden_dim = w_ih.shape[0]
    output_dim = w_lin.shape[0]

    # (8, 128)-aligned, lane-dense padded sizes.
    b_pad = _round_up(max(batch, 8), 8)
    e_pad = _round_up(emb_dim, 128)
    h_pad = _round_up(hidden_dim, 128)
    o_pad = _round_up(output_dim, 128)

    # Embedding lookup (frozen pretrained table) -- glue in plain JAX.
    # TODO(synk): for large vocab / long sequences, gather inside the kernel
    # via scalar prefetch of token ids with the table DMA'd (or resident) in VMEM.
    embedded = jnp.take(emb_table, text, axis=0)  # (T, batch, emb_dim)

    # Zero-pad operands; zeros are exact no-ops in every dot product.
    x = (jnp.zeros((seq_len, b_pad, e_pad), jnp.float32)
         .at[:, :batch, :emb_dim].set(embedded)
         .reshape(seq_len * b_pad, e_pad))

    w_ih_t = (jnp.zeros((e_pad, h_pad), jnp.float32)
              .at[:emb_dim, :hidden_dim].set(jnp.transpose(w_ih)))
    w_hh_t = (jnp.zeros((h_pad, h_pad), jnp.float32)
              .at[:hidden_dim, :hidden_dim].set(jnp.transpose(w_hh)))
    b_rnn = (jnp.zeros((1, h_pad), jnp.float32)
             .at[0, :hidden_dim].set(b_ih + b_hh))
    w_lin_t = (jnp.zeros((h_pad, o_pad), jnp.float32)
               .at[:hidden_dim, :output_dim].set(jnp.transpose(w_lin)))
    b_lin2 = (jnp.zeros((1, o_pad), jnp.float32)
              .at[0, :output_dim].set(b_lin))

    kernel = _make_rnn_kernel(seq_len, b_pad)
    vmem_spec = pl.BlockSpec(memory_space=pltpu.MemorySpace.VMEM)

    out_pad = pl.pallas_call(
        kernel,
        out_shape=jax.ShapeDtypeStruct((b_pad, o_pad), jnp.float32),
        in_specs=[vmem_spec] * 6,
        out_specs=vmem_spec,
        scratch_shapes=[
            pltpu.VMEM((seq_len * b_pad, h_pad), jnp.float32),  # hoisted xproj
        ],
    )(x, w_ih_t, w_hh_t, b_rnn, w_lin_t, b_lin2)

    return out_pad[:batch, :output_dim]


# Compile padding + kernel together once (shapes are static under jit).
rnn_forward_jit = jax.jit(rnn_forward)


if __name__ == "__main__":
    # Small, module-consistent shapes.
    vocab_size = 50       # input_dim
    embedding_dim = 16
    hidden_dim = 32
    output_dim = 4
    seq_len = 8
    batch = 2

    key = jax.random.PRNGKey(0)
    k_emb, k_wih, k_whh, k_bih, k_bhh, k_wl, k_bl, k_txt = jax.random.split(key, 8)

    # Deterministic synthetic parameters (shapes per nn.Embedding / nn.RNN / nn.Linear).
    emb_table = jax.random.normal(k_emb, (vocab_size, embedding_dim), jnp.float32) * 0.1
    w_ih = jax.random.normal(k_wih, (hidden_dim, embedding_dim), jnp.float32) * 0.1
    w_hh = jax.random.normal(k_whh, (hidden_dim, hidden_dim), jnp.float32) * 0.1
    b_ih = jax.random.normal(k_bih, (hidden_dim,), jnp.float32) * 0.1
    b_hh = jax.random.normal(k_bhh, (hidden_dim,), jnp.float32) * 0.1
    w_lin = jax.random.normal(k_wl, (output_dim, hidden_dim), jnp.float32) * 0.1
    b_lin = jax.random.normal(k_bl, (output_dim,), jnp.float32) * 0.1

    text = jax.random.randint(k_txt, (seq_len, batch), 0, vocab_size, jnp.int32)

    out = rnn_forward_jit(text, emb_table, w_ih, w_hh, b_ih, b_hh, w_lin, b_lin)
    out = jax.block_until_ready(out)

    # Pure-JAX reference for a sanity check (matches torch.nn.RNN semantics:
    # h_t = tanh(x_t W_ih^T + b_ih + h_{t-1} W_hh^T + b_hh), h_0 = 0).
    def ref(text):
        emb = jnp.take(emb_table, text, axis=0)
        h = jnp.zeros((batch, hidden_dim), jnp.float32)

        def step(h, x_t):
            h_new = jnp.tanh(x_t @ w_ih.T + b_ih + h @ w_hh.T + b_hh)
            return h_new, h_new

        _, hs = jax.lax.scan(step, h, emb)
        mean_h = jnp.mean(hs, axis=0)
        return mean_h @ w_lin.T + b_lin

    ref_out = ref(text)
    assert out.shape == (batch, output_dim)
    assert jnp.allclose(out, ref_out, atol=1e-5, rtol=1e-5), (out, ref_out)

    print("KERNEL_OK")
</pallas_src>

<mosaic_0001>
module attributes {stable_mosaic.version = 11 : i64} {
  func.func @rnn_kernel(%arg0: memref<64x128xf32, #tpu.memory_space<vmem>>, %arg1: memref<128x128xf32, #tpu.memory_space<vmem>>, %arg2: memref<128x128xf32, #tpu.memory_space<vmem>>, %arg3: memref<1x128xf32, #tpu.memory_space<vmem>>, %arg4: memref<128x128xf32, #tpu.memory_space<vmem>>, %arg5: memref<1x128xf32, #tpu.memory_space<vmem>>, %arg6: memref<8x128xf32, #tpu.memory_space<vmem>>, %arg7: memref<64x128xf32, #tpu.memory_space<vmem>>) attributes {dimension_semantics = [], scalar_prefetch = 0 : i64, scratch_operands = 1 : i64, tpu.core_type = #tpu.core_type<tc>} {
    %c0 = arith.constant 0 : index
    %c0_0 = arith.constant 0 : index
    %0 = vector.load %arg0[%c0, %c0_0] : memref<64x128xf32, #tpu.memory_space<vmem>>, vector<64x128xf32>
    %c0_1 = arith.constant 0 : index
    %c0_2 = arith.constant 0 : index
    %1 = vector.load %arg1[%c0_1, %c0_2] : memref<128x128xf32, #tpu.memory_space<vmem>>, vector<128x128xf32>
    %cst = arith.constant dense<0.000000e+00> : vector<64x128xf32>
    %2 = tpu.matmul %0, %1, %cst {dimension_numbers = #tpu.dot_dimension_numbers<[1], [0], [0], [1], [0, 0, 1, 1], [], []>} : vector<64x128xf32>, vector<128x128xf32>, vector<64x128xf32> -> vector<64x128xf32>
    %c0_3 = arith.constant 0 : index
    %c0_4 = arith.constant 0 : index
    %3 = vector.load %arg3[%c0_3, %c0_4] : memref<1x128xf32, #tpu.memory_space<vmem>>, vector<1x128xf32>
    %4 = vector.broadcast %3 : vector<1x128xf32> to vector<64x128xf32>
    %5 = arith.addf %2, %4 : vector<64x128xf32>
    %c0_5 = arith.constant 0 : index
    %c0_6 = arith.constant 0 : index
    %6 = vector.load %arg7[%c0_5, %c0_6] : memref<64x128xf32, #tpu.memory_space<vmem>>, vector<64x128xf32>
    tpu.vector_store %arg7[%c0_5, %c0_6], %5 {strides = array<i32>} : memref<64x128xf32, #tpu.memory_space<vmem>>, vector<64x128xf32>,
    %c0_7 = arith.constant 0 : index
    %c0_8 = arith.constant 0 : index
    %7 = vector.load %arg2[%c0_7, %c0_8] : memref<128x128xf32, #tpu.memory_space<vmem>>, vector<128x128xf32>
    %cst_9 = arith.constant 0.000000e+00 : f32
    %8 = vector.broadcast %cst_9 : f32 to vector<8x128xf32>
    %cst_10 = arith.constant 0.000000e+00 : f32
    %9 = vector.broadcast %cst_10 : f32 to vector<8x128xf32>
    %c0_i32 = arith.constant 0 : i32
    %c8_i32 = arith.constant 8 : i32
    %10 = arith.muli %c0_i32, %c8_i32 : i32
    %11 = tpu.assume_multiple %10, 8 : i32
    %12 = arith.index_cast %11 : i32 to index
    %c0_11 = arith.constant 0 : index
    %13 = vector.load %arg7[%12, %c0_11] : memref<64x128xf32, #tpu.memory_space<vmem>>, vector<8x128xf32>
    %cst_12 = arith.constant dense<0.000000e+00> : vector<8x128xf32>
    %14 = tpu.matmul %8, %7, %cst_12 {dimension_numbers = #tpu.dot_dimension_numbers<[1], [0], [0], [1], [0, 0, 1, 1], [], []>} : vector<8x128xf32>, vector<128x128xf32>, vector<8x128xf32> -> vector<8x128xf32>
    %15 = arith.addf %13, %14 : vector<8x128xf32>
    %16 = math.tanh %15 : vector<8x128xf32>
    %17 = arith.addf %9, %16 : vector<8x128xf32>
    %c1_i32 = arith.constant 1 : i32
    %c8_i32_13 = arith.constant 8 : i32
    %18 = arith.muli %c1_i32, %c8_i32_13 : i32
    %19 = tpu.assume_multiple %18, 8 : i32
    %20 = arith.index_cast %19 : i32 to index
    %c0_14 = arith.constant 0 : index
    %21 = vector.load %arg7[%20, %c0_14] : memref<64x128xf32, #tpu.memory_space<vmem>>, vector<8x128xf32>
    %cst_15 = arith.constant dense<0.000000e+00> : vector<8x128xf32>
    %22 = tpu.matmul %16, %7, %cst_15 {dimension_numbers = #tpu.dot_dimension_numbers<[1], [0], [0], [1], [0, 0, 1, 1], [], []>} : vector<8x128xf32>, vector<128x128xf32>, vector<8x128xf32> -> vector<8x128xf32>
    %23 = arith.addf %21, %22 : vector<8x128xf32>
    %24 = math.tanh %23 : vector<8x128xf32>
    %25 = arith.addf %17, %24 : vector<8x128xf32>
    %c2_i32 = arith.constant 2 : i32
    %c8_i32_16 = arith.constant 8 : i32
    %26 = arith.muli %c2_i32, %c8_i32_16 : i32
    %27 = tpu.assume_multiple %26, 8 : i32
    %28 = arith.index_cast %27 : i32 to index
    %c0_17 = arith.constant 0 : index
    %29 = vector.load %arg7[%28, %c0_17] : memref<64x128xf32, #tpu.memory_space<vmem>>, vector<8x128xf32>
    %cst_18 = arith.constant dense<0.000000e+00> : vector<8x128xf32>
    %30 = tpu.matmul %24, %7, %cst_18 {dimension_numbers = #tpu.dot_dimension_numbers<[1], [0], [0], [1], [0, 0, 1, 1], [], []>} : vector<8x128xf32>, vector<128x128xf32>, vector<8x128xf32> -> vector<8x128xf32>
    %31 = arith.addf %29, %30 : vector<8x128xf32>
    %32 = math.tanh %31 : vector<8x128xf32>
    %33 = arith.addf %25, %32 : vector<8x128xf32>
    %c3_i32 = arith.constant 3 : i32
    %c8_i32_19 = arith.constant 8 : i32
    %34 = arith.muli %c3_i32, %c8_i32_19 : i32
    %35 = tpu.assume_multiple %34, 8 : i32
    %36 = arith.index_cast %35 : i32 to index
    %c0_20 = arith.constant 0 : index
    %37 = vector.load %arg7[%36, %c0_20] : memref<64x128xf32, #tpu.memory_space<vmem>>, vector<8x128xf32>
    %cst_21 = arith.constant dense<0.000000e+00> : vector<8x128xf32>
    %38 = tpu.matmul %32, %7, %cst_21 {dimension_numbers = #tpu.dot_dimension_numbers<[1], [0], [0], [1], [0, 0, 1, 1], [], []>} : vector<8x128xf32>, vector<128x128xf32>, vector<8x128xf32> -> vector<8x128xf32>
    %39 = arith.addf %37, %38 : vector<8x128xf32>
    %40 = math.tanh %39 : vector<8x128xf32>
    %41 = arith.addf %33, %40 : vector<8x128xf32>
    %c4_i32 = arith.constant 4 : i32
    %c8_i32_22 = arith.constant 8 : i32
    %42 = arith.muli %c4_i32, %c8_i32_22 : i32
    %43 = tpu.assume_multiple %42, 8 : i32
    %44 = arith.index_cast %43 : i32 to index
    %c0_23 = arith.constant 0 : index
    %45 = vector.load %arg7[%44, %c0_23] : memref<64x128xf32, #tpu.memory_space<vmem>>, vector<8x128xf32>
    %cst_24 = arith.constant dense<0.000000e+00> : vector<8x128xf32>
    %46 = tpu.matmul %40, %7, %cst_24 {dimension_numbers = #tpu.dot_dimension_numbers<[1], [0], [0], [1], [0, 0, 1, 1], [], []>} : vector<8x128xf32>, vector<128x128xf32>, vector<8x128xf32> -> vector<8x128xf32>
    %47 = arith.addf %45, %46 : vector<8x128xf32>
    %48 = math.tanh %47 : vector<8x128xf32>
    %49 = arith.addf %41, %48 : vector<8x128xf32>
    %c5_i32 = arith.constant 5 : i32
    %c8_i32_25 = arith.constant 8 : i32
    %50 = arith.muli %c5_i32, %c8_i32_25 : i32
    %51 = tpu.assume_multiple %50, 8 : i32
    %52 = arith.index_cast %51 : i32 to index
    %c0_26 = arith.constant 0 : index
    %53 = vector.load %arg7[%52, %c0_26] : memref<64x128xf32, #tpu.memory_space<vmem>>, vector<8x128xf32>
    %cst_27 = arith.constant dense<0.000000e+00> : vector<8x128xf32>
    %54 = tpu.matmul %48, %7, %cst_27 {dimension_numbers = #tpu.dot_dimension_numbers<[1], [0], [0], [1], [0, 0, 1, 1], [], []>} : vector<8x128xf32>, vector<128x128xf32>, vector<8x128xf32> -> vector<8x128xf32>
    %55 = arith.addf %53, %54 : vector<8x128xf32>
    %56 = math.tanh %55 : vector<8x128xf32>
    %57 = arith.addf %49, %56 : vector<8x128xf32>
    %c6_i32 = arith.constant 6 : i32
    %c8_i32_28 = arith.constant 8 : i32
    %58 = arith.muli %c6_i32, %c8_i32_28 : i32
    %59 = tpu.assume_multiple %58, 8 : i32
    %60 = arith.index_cast %59 : i32 to index
    %c0_29 = arith.constant 0 : index
    %61 = vector.load %arg7[%60, %c0_29] : memref<64x128xf32, #tpu.memory_space<vmem>>, vector<8x128xf32>
    %cst_30 = arith.constant dense<0.000000e+00> : vector<8x128xf32>
    %62 = tpu.matmul %56, %7, %cst_30 {dimension_numbers = #tpu.dot_dimension_numbers<[1], [0], [0], [1], [0, 0, 1, 1], [], []>} : vector<8x128xf32>, vector<128x128xf32>, vector<8x128xf32> -> vector<8x128xf32>
    %63 = arith.addf %61, %62 : vector<8x128xf32>
    %64 = math.tanh %63 : vector<8x128xf32>
    %65 = arith.addf %57, %64 : vector<8x128xf32>
    %c7_i32 = arith.constant 7 : i32
    %c8_i32_31 = arith.constant 8 : i32
    %66 = arith.muli %c7_i32, %c8_i32_31 : i32
    %67 = tpu.assume_multiple %66, 8 : i32
    %68 = arith.index_cast %67 : i32 to index
    %c0_32 = arith.constant 0 : index
    %69 = vector.load %arg7[%68, %c0_32] : memref<64x128xf32, #tpu.memory_space<vmem>>, vector<8x128xf32>
    %cst_33 = arith.constant dense<0.000000e+00> : vector<8x128xf32>
    %70 = tpu.matmul %64, %7, %cst_33 {dimension_numbers = #tpu.dot_dimension_numbers<[1], [0], [0], [1], [0, 0, 1, 1], [], []>} : vector<8x128xf32>, vector<128x128xf32>, vector<8x128xf32> -> vector<8x128xf32>
    %71 = arith.addf %69, %70 : vector<8x128xf32>
    %72 = math.tanh %71 : vector<8x128xf32>
    %73 = arith.addf %65, %72 : vector<8x128xf32>
    %c8_i32_34 = arith.constant 8 : i32
    %cst_35 = arith.constant 1.250000e-01 : f32
    %74 = vector.broadcast %cst_35 : f32 to vector<8x128xf32>
    %75 = arith.mulf %73, %74 : vector<8x128xf32>
    %c0_36 = arith.constant 0 : index
    %c0_37 = arith.constant 0 : index
    %76 = vector.load %arg4[%c0_36, %c0_37] : memref<128x128xf32, #tpu.memory_space<vmem>>, vector<128x128xf32>
    %cst_38 = arith.constant dense<0.000000e+00> : vector<8x128xf32>
    %77 = tpu.matmul %75, %76, %cst_38 {dimension_numbers = #tpu.dot_dimension_numbers<[1], [0], [0], [1], [0, 0, 1, 1], [], []>} : vector<8x128xf32>, vector<128x128xf32>, vector<8x128xf32> -> vector<8x128xf32>
    %c0_39 = arith.constant 0 : index
    %c0_40 = arith.constant 0 : index
    %78 = vector.load %arg5[%c0_39, %c0_40] : memref<1x128xf32, #tpu.memory_space<vmem>>, vector<1x128xf32>
    %79 = vector.broadcast %78 : vector<1x128xf32> to vector<8x128xf32>
    %80 = arith.addf %77, %79 : vector<8x128xf32>
    %c0_41 = arith.constant 0 : index
    %c0_42 = arith.constant 0 : index
    %81 = vector.load %arg6[%c0_41, %c0_42] : memref<8x128xf32, #tpu.memory_space<vmem>>, vector<8x128xf32>
    tpu.vector_store %arg6[%c0_41, %c0_42], %80 {strides = array<i32>} : memref<8x128xf32, #tpu.memory_space<vmem>>, vector<8x128xf32>,
    return
  }
}

</mosaic_0001>

<llo_original>
// kernel: rnn_forward.1
$region0: #{rnn_forward.1}
  #allocation0 [shape = 'u32[]', space=smem, size = 0x4, offset = 0x4, fixed_abs, tag = 'smem constant byte address 0x4 - core index']
  #allocation1 [shape = 'u32[144,128]{1,0:T(1,128)}', space=vmem, size = 0x12000, scoped, tag = 'internal scratch']
  #allocation2 [shape = 'f32[64,128]{1,0:T(8,128)}', space=vmem, size = 0x8000, scoped, tag = 'scratch operand']
  %s0 = inlined_call_operand.vmem [shape: f32[64,128], index: 0, kind: input, shape index: {}]
  %s1 = inlined_call_operand.vmem [shape: f32[128,128], index: 1, kind: input, shape index: {}]
  %s2 = inlined_call_operand.vmem [shape: f32[128,128], index: 2, kind: input, shape index: {}]
  %s3 = inlined_call_operand.vmem [shape: f32[1,128], index: 3, kind: input, shape index: {}]
  %s4 = inlined_call_operand.vmem [shape: f32[128,128], index: 4, kind: input, shape index: {}]
  %s5 = inlined_call_operand.vmem [shape: f32[1,128], index: 5, kind: input, shape index: {}]
  %s6 = inlined_call_operand.vmem [shape: f32[8,128], index: 6, kind: output, shape index: {}]
  %s7 = sld [smem:[#allocation0]]
  $region34: #{rnn_forward.1} parent=0
    _
  %s9 = ssub.s32 1, %s7
  %s10 = scalar_select 0, %s9, %s7
  // Predicated region
  $region2: #{rnn_forward.1} parent=0 // pred_check
    _
  $region3: #{rnn_forward.1} parent=0 // pred_check_branch
    %12 = sbr.rel (0) target = $region5
  $region4: #{rnn_forward.1} parent=0 // pred_region
    _
  $region5: #{rnn_forward.1} parent=0 // pred_fallthru
    _
  // Predicated region
  $region6: #{rnn_forward.1} parent=0 // pred_check
    _
  $region7: #{rnn_forward.1} parent=0 // pred_check_branch
    %14 = sbr.rel (0) target = $region9
  $region8: #{rnn_forward.1} parent=0 // pred_region
    _
  $region9: #{rnn_forward.1} parent=0 // pred_fallthru
    _
  // Predicated region
  $region10: #{rnn_forward.1} parent=0 // pred_check
    _
  $region11: #{rnn_forward.1} parent=0 // pred_check_branch
    %16 = sbr.rel (0) target = $region13
  $region12: #{rnn_forward.1} parent=0 // pred_region
    _
  $region13: #{rnn_forward.1} parent=0 // pred_fallthru
    _
  // Predicated region
  $region14: #{rnn_forward.1} parent=0 // pred_check
    _
  $region15: #{rnn_forward.1} parent=0 // pred_check_branch
    %18 = sbr.rel (0) target = $region17
  $region16: #{rnn_forward.1} parent=0 // pred_region
    _
  $region17: #{rnn_forward.1} parent=0 // pred_fallthru
    _
  // Predicated region
  $region18: #{rnn_forward.1} parent=0 // pred_check
    _
  $region19: #{rnn_forward.1} parent=0 // pred_check_branch
    %20 = sbr.rel (0) target = $region21
  $region20: #{rnn_forward.1} parent=0 // pred_region
    _
  $region21: #{rnn_forward.1} parent=0 // pred_fallthru
    _
  // Predicated region
  $region22: #{rnn_forward.1} parent=0 // pred_check
    _
  $region23: #{rnn_forward.1} parent=0 // pred_check_branch
    %22 = sbr.rel (0) target = $region25
  $region24: #{rnn_forward.1} parent=0 // pred_region
    _
  $region25: #{rnn_forward.1} parent=0 // pred_fallthru
    _
  %v23 = vld [vmem:[%s0] sm:$0xff]
  %v24 = vld [vmem:[%s0 + $0x8] sm:$0xff]
  %v25 = vld [vmem:[%s0 + $0x10] sm:$0xff]
  %v26 = vld [vmem:[%s0 + $0x18] sm:$0xff]
  %v27 = vld [vmem:[%s0 + $0x20] sm:$0xff]
  %v28 = vld [vmem:[%s0 + $0x28] sm:$0xff]
  %v29 = vld [vmem:[%s0 + $0x30] sm:$0xff]
  %v30 = vld [vmem:[%s0 + $0x38] sm:$0xff]
  %v31 = vld [vmem:[%s1] sm:$0xff]
  %v32 = vld [vmem:[%s1 + $0x8] sm:$0xff]
  %v33 = vld [vmem:[%s1 + $0x10] sm:$0xff]
  %v34 = vld [vmem:[%s1 + $0x18] sm:$0xff]
  %v35 = vld [vmem:[%s1 + $0x20] sm:$0xff]
  %v36 = vld [vmem:[%s1 + $0x28] sm:$0xff]
  %v37 = vld [vmem:[%s1 + $0x30] sm:$0xff]
  %v38 = vld [vmem:[%s1 + $0x38] sm:$0xff]
  %v39 = vld [vmem:[%s1 + $0x40] sm:$0xff]
  %v40 = vld [vmem:[%s1 + $0x48] sm:$0xff]
  %v41 = vld [vmem:[%s1 + $0x50] sm:$0xff]
  %v42 = vld [vmem:[%s1 + $0x58] sm:$0xff]
  %v43 = vld [vmem:[%s1 + $0x60] sm:$0xff]
  %v44 = vld [vmem:[%s1 + $0x68] sm:$0xff]
  %v45 = vld [vmem:[%s1 + $0x70] sm:$0xff]
  %v46 = vld [vmem:[%s1 + $0x78] sm:$0xff]
  %v47 = vld [vmem:[%s3] sm:$0x1]
  %v49 = vlaneseq
  %v50 = vshrl.u32 %v49, 7
  %v51 = vsub.s32 0, %v50
  %v52 = vrot.slane %v47, %v51
  %54 = vmatprep.subr.mxu0 0.0
  %55 = vmatpush1.msra.mxu0 %v31
  %56 = vmatprep.subr.mxu0 0.0
  %57 = vmatpush1.msra.mxu0 %v32
  %58 = vmatprep.subr.mxu0 0.0
  %59 = vmatpush1.msra.mxu0 %v33
  %60 = vmatprep.subr.mxu0 0.0
  %61 = vmatpush1.msra.mxu0 %v34
  %62 = vmatprep.subr.mxu0 0.0
  %63 = vmatpush1.msra.mxu0 %v35
  %64 = vmatprep.subr.mxu0 0.0
  %65 = vmatpush1.msra.mxu0 %v36
  %66 = vmatprep.subr.mxu0 0.0
  %67 = vmatpush1.msra.mxu0 %v37
  %68 = vmatprep.subr.mxu0 0.0
  %69 = vmatpush1.msra.mxu0 %v38
  %70 = vmatprep.subr.mxu0 0.0
  %71 = vmatpush1.msra.mxu0 %v39
  %72 = vmatprep.subr.mxu0 0.0
  %73 = vmatpush1.msra.mxu0 %v40
  %74 = vmatprep.subr.mxu0 0.0
  %75 = vmatpush1.msra.mxu0 %v41
  %76 = vmatprep.subr.mxu0 0.0
  %77 = vmatpush1.msra.mxu0 %v42
  %78 = vmatprep.subr.mxu0 0.0
  %79 = vmatpush1.msra.mxu0 %v43
  %80 = vmatprep.subr.mxu0 0.0
  %81 = vmatpush1.msra.mxu0 %v44
  %82 = vmatprep.subr.mxu0 0.0
  %83 = vmatpush1.msra.mxu0 %v45
  %84 = vmatprep.subr.mxu0 0.0
  %85 = vmatpush1.msra.mxu0 %v46
  %86 = vmatprep.subr.mxu0 0.0
  %87 = vmatpush1.msra.mxu0 0.0
  %88 = vmatprep.subr.mxu0 0.0
  %89 = vmatpush1.msra.mxu0 0.0
  %90 = vmatprep.subr.mxu0 0.0
  %91 = vmatpush1.msra.mxu0 0.0
  %92 = vmatprep.subr.mxu0 0.0
  %93 = vmatpush1.msra.mxu0 0.0
  %94 = vmatprep.subr.mxu0 0.0
  %95 = vmatpush1.msra.mxu0 0.0
  %96 = vmatprep.subr.mxu0 0.0
  %97 = vmatpush1.msra.mxu0 0.0
  %98 = vmatprep.subr.mxu0 0.0
  %99 = vmatpush1.msra.mxu0 0.0
  %100 = vmatprep.subr.mxu0 0.0
  %101 = vmatpush1.msra.mxu0 0.0
  %102 = vmatprep.subr.mxu0 0.0
  %103 = vmatpush1.msra.mxu0 0.0
  %104 = vmatprep.subr.mxu0 0.0
  %105 = vmatpush1.msra.mxu0 0.0
  %106 = vmatprep.subr.mxu0 0.0
  %107 = vmatpush1.msra.mxu0 0.0
  %108 = vmatprep.subr.mxu0 0.0
  %109 = vmatpush1.msra.mxu0 0.0
  %110 = vmatprep.subr.mxu0 0.0
  %111 = vmatpush1.msra.mxu0 0.0
  %112 = vmatprep.subr.mxu0 0.0
  %113 = vmatpush1.msra.mxu0 0.0
  %114 = vmatprep.subr.mxu0 0.0
  %115 = vmatpush1.msra.mxu0 0.0
  %116 = vmatprep.subr.mxu0 0.0
  %117 = vmatpush1.msra.mxu0 0.0
  %118 = vmatprep.mubr.f32.mxu0 0.0
  %119 = vmatmul.mubr.f32.gmra.mrb[0].mxu0 %v23
  %v120 = vpop.f32.mrb[0].mxu0
  %v121 = vadd.f32 %v52, %v120
  %v122 = vpop.f32.mrb[0].mxu0
  %123 = vmatprep.mubr.f32.mxu0 0.0
  %124 = vmatmul.mubr.f32.gmra.mrb[0].mxu0 %v24
  %v125 = vpop.f32.mrb[0].mxu0
  %v126 = vadd.f32 %v52, %v125
  %v127 = vpop.f32.mrb[0].mxu0
  %128 = vmatprep.mubr.f32.mxu0 0.0
  %129 = vmatmul.mubr.f32.gmra.mrb[0].mxu0 %v25
  %v130 = vpop.f32.mrb[0].mxu0
  %v131 = vadd.f32 %v52, %v130
  %v132 = vpop.f32.mrb[0].mxu0
  %133 = vmatprep.mubr.f32.mxu0 0.0
  %134 = vmatmul.mubr.f32.gmra.mrb[0].mxu0 %v26
  %v135 = vpop.f32.mrb[0].mxu0
  %v136 = vadd.f32 %v52, %v135
  %v137 = vpop.f32.mrb[0].mxu0
  %138 = vmatprep.mubr.f32.mxu0 0.0
  %139 = vmatmul.mubr.f32.gmra.mrb[0].mxu0 %v27
  %v140 = vpop.f32.mrb[0].mxu0
  %v141 = vadd.f32 %v52, %v140
  %v142 = vpop.f32.mrb[0].mxu0
  %143 = vmatprep.mubr.f32.mxu0 0.0
  %144 = vmatmul.mubr.f32.gmra.mrb[0].mxu0 %v28
  %v145 = vpop.f32.mrb[0].mxu0
  %v146 = vadd.f32 %v52, %v145
  %v147 = vpop.f32.mrb[0].mxu0
  %148 = vmatprep.mubr.f32.mxu0 0.0
  %149 = vmatmul.mubr.f32.gmra.mrb[0].mxu0 %v29
  %v150 = vpop.f32.mrb[0].mxu0
  %v151 = vadd.f32 %v52, %v150
  %v152 = vpop.f32.mrb[0].mxu0
  %153 = vmatprep.mubr.f32.mxu0 0.0
  %154 = vmatmul.mubr.f32.gmra.mrb[0].mxu0 %v30
  %v155 = vpop.f32.mrb[0].mxu0
  %v156 = vadd.f32 %v52, %v155
  %v157 = vpop.f32.mrb[0].mxu0
  %158 = vdwg.mxu0
  %159 = vst [vmem:[#allocation2] sm:$0xff] %v121
  %160 = vst [vmem:[#allocation2 + $0x8] sm:$0xff] %v126
  %161 = vst [vmem:[#allocation2 + $0x10] sm:$0xff] %v131
  %162 = vst [vmem:[#allocation2 + $0x18] sm:$0xff] %v136
  %163 = vst [vmem:[#allocation2 + $0x20] sm:$0xff] %v141
  %164 = vst [vmem:[#allocation2 + $0x28] sm:$0xff] %v146
  %165 = vst [vmem:[#allocation2 + $0x30] sm:$0xff] %v151
  %166 = vst [vmem:[#allocation2 + $0x38] sm:$0xff] %v156
  %v167 = vld [vmem:[%s2] sm:$0xff]
  %v168 = vld [vmem:[%s2 + $0x8] sm:$0xff]
  %v169 = vld [vmem:[%s2 + $0x10] sm:$0xff]
  %v170 = vld [vmem:[%s2 + $0x18] sm:$0xff]
  %v171 = vld [vmem:[%s2 + $0x20] sm:$0xff]
  %v172 = vld [vmem:[%s2 + $0x28] sm:$0xff]
  %v173 = vld [vmem:[%s2 + $0x30] sm:$0xff]
  %v174 = vld [vmem:[%s2 + $0x38] sm:$0xff]
  %v175 = vld [vmem:[%s2 + $0x40] sm:$0xff]
  %v176 = vld [vmem:[%s2 + $0x48] sm:$0xff]
  %v177 = vld [vmem:[%s2 + $0x50] sm:$0xff]
  %v178 = vld [vmem:[%s2 + $0x58] sm:$0xff]
  %v179 = vld [vmem:[%s2 + $0x60] sm:$0xff]
  %v180 = vld [vmem:[%s2 + $0x68] sm:$0xff]
  %v181 = vld [vmem:[%s2 + $0x70] sm:$0xff]
  %v182 = vld [vmem:[%s2 + $0x78] sm:$0xff]
  %v183 = vld [vmem:[#allocation2] sm:$0xff]
  %184 = vmatprep.subr.mxu0 0.0
  %185 = vmatpush1.msra.mxu0 %v167
  %186 = vmatprep.subr.mxu0 0.0
  %187 = vmatpush1.msra.mxu0 %v168
  %188 = vmatprep.subr.mxu0 0.0
  %189 = vmatpush1.msra.mxu0 %v169
  %190 = vmatprep.subr.mxu0 0.0
  %191 = vmatpush1.msra.mxu0 %v170
  %192 = vmatprep.subr.mxu0 0.0
  %193 = vmatpush1.msra.mxu0 %v171
  %194 = vmatprep.subr.mxu0 0.0
  %195 = vmatpush1.msra.mxu0 %v172
  %196 = vmatprep.subr.mxu0 0.0
  %197 = vmatpush1.msra.mxu0 %v173
  %198 = vmatprep.subr.mxu0 0.0
  %199 = vmatpush1.msra.mxu0 %v174
  %200 = vmatprep.subr.mxu0 0.0
  %201 = vmatpush1.msra.mxu0 %v175
  %202 = vmatprep.subr.mxu0 0.0
  %203 = vmatpush1.msra.mxu0 %v176
  %204 = vmatprep.subr.mxu0 0.0
  %205 = vmatpush1.msra.mxu0 %v177
  %206 = vmatprep.subr.mxu0 0.0
  %207 = vmatpush1.msra.mxu0 %v178
  %208 = vmatprep.subr.mxu0 0.0
  %209 = vmatpush1.msra.mxu0 %v179
  %210 = vmatprep.subr.mxu0 0.0
  %211 = vmatpush1.msra.mxu0 %v180
  %212 = vmatprep.subr.mxu0 0.0
  %213 = vmatpush1.msra.mxu0 %v181
  %214 = vmatprep.subr.mxu0 0.0
  %215 = vmatpush1.msra.mxu0 %v182
  %216 = vmatprep.subr.mxu0 0.0
  %217 = vmatpush1.msra.mxu0 0.0
  %218 = vmatprep.subr.mxu0 0.0
  %219 = vmatpush1.msra.mxu0 0.0
  %220 = vmatprep.subr.mxu0 0.0
  %221 = vmatpush1.msra.mxu0 0.0
  %222 = vmatprep.subr.mxu0 0.0
  %223 = vmatpush1.msra.mxu0 0.0
  %224 = vmatprep.subr.mxu0 0.0
  %225 = vmatpush1.msra.mxu0 0.0
  %226 = vmatprep.subr.mxu0 0.0
  %227 = vmatpush1.msra.mxu0 0.0
  %228 = vmatprep.subr.mxu0 0.0
  %229 = vmatpush1.msra.mxu0 0.0
  %230 = vmatprep.subr.mxu0 0.0
  %231 = vmatpush1.msra.mxu0 0.0
  %232 = vmatprep.subr.mxu0 0.0
  %233 = vmatpush1.msra.mxu0 0.0
  %234 = vmatprep.subr.mxu0 0.0
  %235 = vmatpush1.msra.mxu0 0.0
  %236 = vmatprep.subr.mxu0 0.0
  %237 = vmatpush1.msra.mxu0 0.0
  %238 = vmatprep.subr.mxu0 0.0
  %239 = vmatpush1.msra.mxu0 0.0
  %240 = vmatprep.subr.mxu0 0.0
  %241 = vmatpush1.msra.mxu0 0.0
  %242 = vmatprep.subr.mxu0 0.0
  %243 = vmatpush1.msra.mxu0 0.0
  %244 = vmatprep.subr.mxu0 0.0
  %245 = vmatpush1.msra.mxu0 0.0
  %246 = vmatprep.subr.mxu0 0.0
  %247 = vmatpush1.msra.mxu0 0.0
  %248 = vmatprep.mubr.f32.mxu0 0.0
  %249 = vmatmul.mubr.f32.gmra.mrb[0].mxu0 0.0
  %v250 = vpop.f32.mrb[0].mxu0
  %v251 = vadd.f32 0.0, %v250
  %v252 = vpop.f32.mrb[0].mxu0
  %253 = vdwg.mxu0
  %v254 = vadd.f32 %v183, %v251
  %v255 = vtanh.pop %v254
  %v256 = vadd.f32 %v255, 0.0
  %s257 = scalar_lea.vmem [#allocation2], 8
  %v258 = vld [vmem:[%s257] sm:$0xff]
  %259 = vmatprep.subr.mxu0 0.0
  %260 = vmatpush1.msra.mxu0 %v167
  %261 = vmatprep.subr.mxu0 0.0
  %262 = vmatpush1.msra.mxu0 %v168
  %263 = vmatprep.subr.mxu0 0.0
  %264 = vmatpush1.msra.mxu0 %v169
  %265 = vmatprep.subr.mxu0 0.0
  %266 = vmatpush1.msra.mxu0 %v170
  %267 = vmatprep.subr.mxu0 0.0
  %268 = vmatpush1.msra.mxu0 %v171
  %269 = vmatprep.subr.mxu0 0.0
  %270 = vmatpush1.msra.mxu0 %v172
  %271 = vmatprep.subr.mxu0 0.0
  %272 = vmatpush1.msra.mxu0 %v173
  %273 = vmatprep.subr.mxu0 0.0
  %274 = vmatpush1.msra.mxu0 %v174
  %275 = vmatprep.subr.mxu0 0.0
  %276 = vmatpush1.msra.mxu0 %v175
  %277 = vmatprep.subr.mxu0 0.0
  %278 = vmatpush1.msra.mxu0 %v176
  %279 = vmatprep.subr.mxu0 0.0
  %280 = vmatpush1.msra.mxu0 %v177
  %281 = vmatprep.subr.mxu0 0.0
  %282 = vmatpush1.msra.mxu0 %v178
  %283 = vmatprep.subr.mxu0 0.0
  %284 = vmatpush1.msra.mxu0 %v179
  %285 = vmatprep.subr.mxu0 0.0
  %286 = vmatpush1.msra.mxu0 %v180
  %287 = vmatprep.subr.mxu0 0.0
  %288 = vmatpush1.msra.mxu0 %v181
  %289 = vmatprep.subr.mxu0 0.0
  %290 = vmatpush1.msra.mxu0 %v182
  %291 = vmatprep.subr.mxu0 0.0
  %292 = vmatpush1.msra.mxu0 0.0
  %293 = vmatprep.subr.mxu0 0.0
  %294 = vmatpush1.msra.mxu0 0.0
  %295 = vmatprep.subr.mxu0 0.0
  %296 = vmatpush1.msra.mxu0 0.0
  %297 = vmatprep.subr.mxu0 0.0
  %298 = vmatpush1.msra.mxu0 0.0
  %299 = vmatprep.subr.mxu0 0.0
  %300 = vmatpush1.msra.mxu0 0.0
  %301 = vmatprep.subr.mxu0 0.0
  %302 = vmatpush1.msra.mxu0 0.0
  %303 = vmatprep.subr.mxu0 0.0
  %304 = vmatpush1.msra.mxu0 0.0
  %305 = vmatprep.subr.mxu0 0.0
  %306 = vmatpush1.msra.mxu0 0.0
  %307 = vmatprep.subr.mxu0 0.0
  %308 = vmatpush1.msra.mxu0 0.0
  %309 = vmatprep.subr.mxu0 0.0
  %310 = vmatpush1.msra.mxu0 0.0
  %311 = vmatprep.subr.mxu0 0.0
  %312 = vmatpush1.msra.mxu0 0.0
  %313 = vmatprep.subr.mxu0 0.0
  %314 = vmatpush1.msra.mxu0 0.0
  %315 = vmatprep.subr.mxu0 0.0
  %316 = vmatpush1.msra.mxu0 0.0
  %317 = vmatprep.subr.mxu0 0.0
  %318 = vmatpush1.msra.mxu0 0.0
  %319 = vmatprep.subr.mxu0 0.0
  %320 = vmatpush1.msra.mxu0 0.0
  %321 = vmatprep.subr.mxu0 0.0
  %322 = vmatpush1.msra.mxu0 0.0
  %323 = vmatprep.mubr.f32.mxu0 0.0
  %324 = vmatmul.mubr.f32.gmra.mrb[0].mxu0 %v255
  %v325 = vpop.f32.mrb[0].mxu0
  %v326 = vadd.f32 0.0, %v325
  %v327 = vpop.f32.mrb[0].mxu0
  %328 = vdwg.mxu0
  %v329 = vadd.f32 %v258, %v326
  %v330 = vtanh.pop %v329
  %v331 = vadd.f32 %v256, %v330
  %s332 = scalar_lea.vmem [#allocation2], 16
  %v333 = vld [vmem:[%s332] sm:$0xff]
  %334 = vmatprep.subr.mxu0 0.0
  %335 = vmatpush1.msra.mxu0 %v167
  %336 = vmatprep.subr.mxu0 0.0
  %337 = vmatpush1.msra.mxu0 %v168
  %338 = vmatprep.subr.mxu0 0.0
  %339 = vmatpush1.msra.mxu0 %v169
  %340 = vmatprep.subr.mxu0 0.0
  %341 = vmatpush1.msra.mxu0 %v170
  %342 = vmatprep.subr.mxu0 0.0
  %343 = vmatpush1.msra.mxu0 %v171
  %344 = vmatprep.subr.mxu0 0.0
  %345 = vmatpush1.msra.mxu0 %v172
  %346 = vmatprep.subr.mxu0 0.0
  %347 = vmatpush1.msra.mxu0 %v173
  %348 = vmatprep.subr.mxu0 0.0
  %349 = vmatpush1.msra.mxu0 %v174
  %350 = vmatprep.subr.mxu0 0.0
  %351 = vmatpush1.msra.mxu0 %v175
  %352 = vmatprep.subr.mxu0 0.0
  %353 = vmatpush1.msra.mxu0 %v176
  %354 = vmatprep.subr.mxu0 0.0
  %355 = vmatpush1.msra.mxu0 %v177
  %356 = vmatprep.subr.mxu0 0.0
  %357 = vmatpush1.msra.mxu0 %v178
  %358 = vmatprep.subr.mxu0 0.0
  %359 = vmatpush1.msra.mxu0 %v179
  %360 = vmatprep.subr.mxu0 0.0
  %361 = vmatpush1.msra.mxu0 %v180
  %362 = vmatprep.subr.mxu0 0.0
  %363 = vmatpush1.msra.mxu0 %v181
  %364 = vmatprep.subr.mxu0 0.0
  %365 = vmatpush1.msra.mxu0 %v182
  %366 = vmatprep.subr.mxu0 0.0
  %367 = vmatpush1.msra.mxu0 0.0
  %368 = vmatprep.subr.mxu0 0.0
  %369 = vmatpush1.msra.mxu0 0.0
  %370 = vmatprep.subr.mxu0 0.0
  %371 = vmatpush1.msra.mxu0 0.0
  %372 = vmatprep.subr.mxu0 0.0
  %373 = vmatpush1.msra.mxu0 0.0
  %374 = vmatprep.subr.mxu0 0.0
  %375 = vmatpush1.msra.mxu0 0.0
  %376 = vmatprep.subr.mxu0 0.0
  %377 = vmatpush1.msra.mxu0 0.0
  %378 = vmatprep.subr.mxu0 0.0
  %379 = vmatpush1.msra.mxu0 0.0
  %380 = vmatprep.subr.mxu0 0.0
  %381 = vmatpush1.msra.mxu0 0.0
  %382 = vmatprep.subr.mxu0 0.0
  %383 = vmatpush1.msra.mxu0 0.0
  %384 = vmatprep.subr.mxu0 0.0
  %385 = vmatpush1.msra.mxu0 0.0
  %386 = vmatprep.subr.mxu0 0.0
  %387 = vmatpush1.msra.mxu0 0.0
  %388 = vmatprep.subr.mxu0 0.0
  %389 = vmatpush1.msra.mxu0 0.0
  %390 = vmatprep.subr.mxu0 0.0
  %391 = vmatpush1.msra.mxu0 0.0
  %392 = vmatprep.subr.mxu0 0.0
  %393 = vmatpush1.msra.mxu0 0.0
  %394 = vmatprep.subr.mxu0 0.0
  %395 = vmatpush1.msra.mxu0 0.0
  %396 = vmatprep.subr.mxu0 0.0
  %397 = vmatpush1.msra.mxu0 0.0
  %398 = vmatprep.mubr.f32.mxu0 0.0
  %399 = vmatmul.mubr.f32.gmra.mrb[0].mxu0 %v330
  %v400 = vpop.f32.mrb[0].mxu0
  %v401 = vadd.f32 0.0, %v400
  %v402 = vpop.f32.mrb[0].mxu0
  %403 = vdwg.mxu0
  %v404 = vadd.f32 %v333, %v401
  %v405 = vtanh.pop %v404
  %v406 = vadd.f32 %v331, %v405
  %s407 = scalar_lea.vmem [#allocation2], 24
  %v408 = vld [vmem:[%s407] sm:$0xff]
  %409 = vmatprep.subr.mxu0 0.0
  %410 = vmatpush1.msra.mxu0 %v167
  %411 = vmatprep.subr.mxu0 0.0
  %412 = vmatpush1.msra.mxu0 %v168
  %413 = vmatprep.subr.mxu0 0.0
  %414 = vmatpush1.msra.mxu0 %v169
  %415 = vmatprep.subr.mxu0 0.0
  %416 = vmatpush1.msra.mxu0 %v170
  %417 = vmatprep.subr.mxu0 0.0
  %418 = vmatpush1.msra.mxu0 %v171
  %419 = vmatprep.subr.mxu0 0.0
  %420 = vmatpush1.msra.mxu0 %v172
  %421 = vmatprep.subr.mxu0 0.0
  %422 = vmatpush1.msra.mxu0 %v173
  %423 = vmatprep.subr.mxu0 0.0
  %424 = vmatpush1.msra.mxu0 %v174
  %425 = vmatprep.subr.mxu0 0.0
  %426 = vmatpush1.msra.mxu0 %v175
  %427 = vmatprep.subr.mxu0 0.0
  %428 = vmatpush1.msra.mxu0 %v176
  %429 = vmatprep.subr.mxu0 0.0
  %430 = vmatpush1.msra.mxu0 %v177
  %431 = vmatprep.subr.mxu0 0.0
  %432 = vmatpush1.msra.mxu0 %v178
  %433 = vmatprep.subr.mxu0 0.0
  %434 = vmatpush1.msra.mxu0 %v179
  %435 = vmatprep.subr.mxu0 0.0
  %436 = vmatpush1.msra.mxu0 %v180
  %437 = vmatprep.subr.mxu0 0.0
  %438 = vmatpush1.msra.mxu0 %v181
  %439 = vmatprep.subr.mxu0 0.0
  %440 = vmatpush1.msra.mxu0 %v182
  %441 = vmatprep.subr.mxu0 0.0
  %442 = vmatpush1.msra.mxu0 0.0
  %443 = vmatprep.subr.mxu0 0.0
  %444 = vmatpush1.msra.mxu0 0.0
  %445 = vmatprep.subr.mxu0 0.0
  %446 = vmatpush1.msra.mxu0 0.0
  %447 = vmatprep.subr.mxu0 0.0
  %448 = vmatpush1.msra.mxu0 0.0
  %449 = vmatprep.subr.mxu0 0.0
  %450 = vmatpush1.msra.mxu0 0.0
  %451 = vmatprep.subr.mxu0 0.0
  %452 = vmatpush1.msra.mxu0 0.0
  %453 = vmatprep.subr.mxu0 0.0
  %454 = vmatpush1.msra.mxu0 0.0
  %455 = vmatprep.subr.mxu0 0.0
  %456 = vmatpush1.msra.mxu0 0.0
  %457 = vmatprep.subr.mxu0 0.0
  %458 = vmatpush1.msra.mxu0 0.0
  %459 = vmatprep.subr.mxu0 0.0
  %460 = vmatpush1.msra.mxu0 0.0
  %461 = vmatprep.subr.mxu0 0.0
  %462 = vmatpush1.msra.mxu0 0.0
  %463 = vmatprep.subr.mxu0 0.0
  %464 = vmatpush1.msra.mxu0 0.0
  %465 = vmatprep.subr.mxu0 0.0
  %466 = vmatpush1.msra.mxu0 0.0
  %467 = vmatprep.subr.mxu0 0.0
  %468 = vmatpush1.msra.mxu0 0.0
  %469 = vmatprep.subr.mxu0 0.0
  %470 = vmatpush1.msra.mxu0 0.0
  %471 = vmatprep.subr.mxu0 0.0
  %472 = vmatpush1.msra.mxu0 0.0
  %473 = vmatprep.mubr.f32.mxu0 0.0
  %474 = vmatmul.mubr.f32.gmra.mrb[0].mxu0 %v405
  %v475 = vpop.f32.mrb[0].mxu0
  %v476 = vadd.f32 0.0, %v475
  %v477 = vpop.f32.mrb[0].mxu0
  %478 = vdwg.mxu0
  %v479 = vadd.f32 %v408, %v476
  %v480 = vtanh.pop %v479
  %v481 = vadd.f32 %v406, %v480
  %s482 = scalar_lea.vmem [#allocation2], 32
  %v483 = vld [vmem:[%s482] sm:$0xff]
  %484 = vmatprep.subr.mxu0 0.0
  %485 = vmatpush1.msra.mxu0 %v167
  %486 = vmatprep.subr.mxu0 0.0
  %487 = vmatpush1.msra.mxu0 %v168
  %488 = vmatprep.subr.mxu0 0.0
  %489 = vmatpush1.msra.mxu0 %v169
  %490 = vmatprep.subr.mxu0 0.0
  %491 = vmatpush1.msra.mxu0 %v170
  %492 = vmatprep.subr.mxu0 0.0
  %493 = vmatpush1.msra.mxu0 %v171
  %494 = vmatprep.subr.mxu0 0.0
  %495 = vmatpush1.msra.mxu0 %v172
  %496 = vmatprep.subr.mxu0 0.0
  %497 = vmatpush1.msra.mxu0 %v173
  %498 = vmatprep.subr.mxu0 0.0
  %499 = vmatpush1.msra.mxu0 %v174
  %500 = vmatprep.subr.mxu0 0.0
  %501 = vmatpush1.msra.mxu0 %v175
  %502 = vmatprep.subr.mxu0 0.0
  %503 = vmatpush1.msra.mxu0 %v176
  %504 = vmatprep.subr.mxu0 0.0
  %505 = vmatpush1.msra.mxu0 %v177
  %506 = vmatprep.subr.mxu0 0.0
  %507 = vmatpush1.msra.mxu0 %v178
  %508 = vmatprep.subr.mxu0 0.0
  %509 = vmatpush1.msra.mxu0 %v179
  %510 = vmatprep.subr.mxu0 0.0
  %511 = vmatpush1.msra.mxu0 %v180
  %512 = vmatprep.subr.mxu0 0.0
  %513 = vmatpush1.msra.mxu0 %v181
  %514 = vmatprep.subr.mxu0 0.0
  %515 = vmatpush1.msra.mxu0 %v182
  %516 = vmatprep.subr.mxu0 0.0
  %517 = vmatpush1.msra.mxu0 0.0
  %518 = vmatprep.subr.mxu0 0.0
  %519 = vmatpush1.msra.mxu0 0.0
  %520 = vmatprep.subr.mxu0 0.0
  %521 = vmatpush1.msra.mxu0 0.0
  %522 = vmatprep.subr.mxu0 0.0
  %523 = vmatpush1.msra.mxu0 0.0
  %524 = vmatprep.subr.mxu0 0.0
  %525 = vmatpush1.msra.mxu0 0.0
  %526 = vmatprep.subr.mxu0 0.0
  %527 = vmatpush1.msra.mxu0 0.0
  %528 = vmatprep.subr.mxu0 0.0
  %529 = vmatpush1.msra.mxu0 0.0
  %530 = vmatprep.subr.mxu0 0.0
  %531 = vmatpush1.msra.mxu0 0.0
  %532 = vmatprep.subr.mxu0 0.0
  %533 = vmatpush1.msra.mxu0 0.0
  %534 = vmatprep.subr.mxu0 0.0
  %535 = vmatpush1.msra.mxu0 0.0
  %536 = vmatprep.subr.mxu0 0.0
  %537 = vmatpush1.msra.mxu0 0.0
  %538 = vmatprep.subr.mxu0 0.0
  %539 = vmatpush1.msra.mxu0 0.0
  %540 = vmatprep.subr.mxu0 0.0
  %541 = vmatpush1.msra.mxu0 0.0
  %542 = vmatprep.subr.mxu0 0.0
  %543 = vmatpush1.msra.mxu0 0.0
  %544 = vmatprep.subr.mxu0 0.0
  %545 = vmatpush1.msra.mxu0 0.0
  %546 = vmatprep.subr.mxu0 0.0
  %547 = vmatpush1.msra.mxu0 0.0
  %548 = vmatprep.mubr.f32.mxu0 0.0
  %549 = vmatmul.mubr.f32.gmra.mrb[0].mxu0 %v480
  %v550 = vpop.f32.mrb[0].mxu0
  %v551 = vadd.f32 0.0, %v550
  %v552 = vpop.f32.mrb[0].mxu0
  %553 = vdwg.mxu0
  %v554 = vadd.f32 %v483, %v551
  %v555 = vtanh.pop %v554
  %v556 = vadd.f32 %v481, %v555
  %s557 = scalar_lea.vmem [#allocation2], 40
  %v558 = vld [vmem:[%s557] sm:$0xff]
  %559 = vmatprep.subr.mxu0 0.0
  %560 = vmatpush1.msra.mxu0 %v167
  %561 = vmatprep.subr.mxu0 0.0
  %562 = vmatpush1.msra.mxu0 %v168
  %563 = vmatprep.subr.mxu0 0.0
  %564 = vmatpush1.msra.mxu0 %v169
  %565 = vmatprep.subr.mxu0 0.0
  %566 = vmatpush1.msra.mxu0 %v170
  %567 = vmatprep.subr.mxu0 0.0
  %568 = vmatpush1.msra.mxu0 %v171
  %569 = vmatprep.subr.mxu0 0.0
  %570 = vmatpush1.msra.mxu0 %v172
  %571 = vmatprep.subr.mxu0 0.0
  %572 = vmatpush1.msra.mxu0 %v173
  %573 = vmatprep.subr.mxu0 0.0
  %574 = vmatpush1.msra.mxu0 %v174
  %575 = vmatprep.subr.mxu0 0.0
  %576 = vmatpush1.msra.mxu0 %v175
  %577 = vmatprep.subr.mxu0 0.0
  %578 = vmatpush1.msra.mxu0 %v176
  %579 = vmatprep.subr.mxu0 0.0
  %580 = vmatpush1.msra.mxu0 %v177
  %581 = vmatprep.subr.mxu0 0.0
  %582 = vmatpush1.msra.mxu0 %v178
  %583 = vmatprep.subr.mxu0 0.0
  %584 = vmatpush1.msra.mxu0 %v179
  %585 = vmatprep.subr.mxu0 0.0
  %586 = vmatpush1.msra.mxu0 %v180
  %587 = vmatprep.subr.mxu0 0.0
  %588 = vmatpush1.msra.mxu0 %v181
  %589 = vmatprep.subr.mxu0 0.0
  %590 = vmatpush1.msra.mxu0 %v182
  %591 = vmatprep.subr.mxu0 0.0
  %592 = vmatpush1.msra.mxu0 0.0
  %593 = vmatprep.subr.mxu0 0.0
  %594 = vmatpush1.msra.mxu0 0.0
  %595 = vmatprep.subr.mxu0 0.0
  %596 = vmatpush1.msra.mxu0 0.0
  %597 = vmatprep.subr.mxu0 0.0
  %598 = vmatpush1.msra.mxu0 0.0
  %599 = vmatprep.subr.mxu0 0.0
  %600 = vmatpush1.msra.mxu0 0.0
  %601 = vmatprep.subr.mxu0 0.0
  %602 = vmatpush1.msra.mxu0 0.0
  %603 = vmatprep.subr.mxu0 0.0
  %604 = vmatpush1.msra.mxu0 0.0
  %605 = vmatprep.subr.mxu0 0.0
  %606 = vmatpush1.msra.mxu0 0.0
  %607 = vmatprep.subr.mxu0 0.0
  %608 = vmatpush1.msra.mxu0 0.0
  %609 = vmatprep.subr.mxu0 0.0
  %610 = vmatpush1.msra.mxu0 0.0
  %611 = vmatprep.subr.mxu0 0.0
  %612 = vmatpush1.msra.mxu0 0.0
  %613 = vmatprep.subr.mxu0 0.0
  %614 = vmatpush1.msra.mxu0 0.0
  %615 = vmatprep.subr.mxu0 0.0
  %616 = vmatpush1.msra.mxu0 0.0
  %617 = vmatprep.subr.mxu0 0.0
  %618 = vmatpush1.msra.mxu0 0.0
  %619 = vmatprep.subr.mxu0 0.0
  %620 = vmatpush1.msra.mxu0 0.0
  %621 = vmatprep.subr.mxu0 0.0
  %622 = vmatpush1.msra.mxu0 0.0
  %623 = vmatprep.mubr.f32.mxu0 0.0
  %624 = vmatmul.mubr.f32.gmra.mrb[0].mxu0 %v555
  %v625 = vpop.f32.mrb[0].mxu0
  %v626 = vadd.f32 0.0, %v625
  %v627 = vpop.f32.mrb[0].mxu0
  %628 = vdwg.mxu0
  %v629 = vadd.f32 %v558, %v626
  %v630 = vtanh.pop %v629
  %v631 = vadd.f32 %v556, %v630
  %s632 = scalar_lea.vmem [#allocation2], 48
  %v633 = vld [vmem:[%s632] sm:$0xff]
  %634 = vmatprep.subr.mxu0 0.0
  %635 = vmatpush1.msra.mxu0 %v167
  %636 = vmatprep.subr.mxu0 0.0
  %637 = vmatpush1.msra.mxu0 %v168
  %638 = vmatprep.subr.mxu0 0.0
  %639 = vmatpush1.msra.mxu0 %v169
  %640 = vmatprep.subr.mxu0 0.0
  %641 = vmatpush1.msra.mxu0 %v170
  %642 = vmatprep.subr.mxu0 0.0
  %643 = vmatpush1.msra.mxu0 %v171
  %644 = vmatprep.subr.mxu0 0.0
  %645 = vmatpush1.msra.mxu0 %v172
  %646 = vmatprep.subr.mxu0 0.0
  %647 = vmatpush1.msra.mxu0 %v173
  %648 = vmatprep.subr.mxu0 0.0
  %649 = vmatpush1.msra.mxu0 %v174
  %650 = vmatprep.subr.mxu0 0.0
  %651 = vmatpush1.msra.mxu0 %v175
  %652 = vmatprep.subr.mxu0 0.0
  %653 = vmatpush1.msra.mxu0 %v176
  %654 = vmatprep.subr.mxu0 0.0
  %655 = vmatpush1.msra.mxu0 %v177
  %656 = vmatprep.subr.mxu0 0.0
  %657 = vmatpush1.msra.mxu0 %v178
  %658 = vmatprep.subr.mxu0 0.0
  %659 = vmatpush1.msra.mxu0 %v179
  %660 = vmatprep.subr.mxu0 0.0
  %661 = vmatpush1.msra.mxu0 %v180
  %662 = vmatprep.subr.mxu0 0.0
  %663 = vmatpush1.msra.mxu0 %v181
  %664 = vmatprep.subr.mxu0 0.0
  %665 = vmatpush1.msra.mxu0 %v182
  %666 = vmatprep.subr.mxu0 0.0
  %667 = vmatpush1.msra.mxu0 0.0
  %668 = vmatprep.subr.mxu0 0.0
  %669 = vmatpush1.msra.mxu0 0.0
  %670 = vmatprep.subr.mxu0 0.0
  %671 = vmatpush1.msra.mxu0 0.0
  %672 = vmatprep.subr.mxu0 0.0
  %673 = vmatpush1.msra.mxu0 0.0
  %674 = vmatprep.subr.mxu0 0.0
  %675 = vmatpush1.msra.mxu0 0.0
  %676 = vmatprep.subr.mxu0 0.0
  %677 = vmatpush1.msra.mxu0 0.0
  %678 = vmatprep.subr.mxu0 0.0
  %679 = vmatpush1.msra.mxu0 0.0
  %680 = vmatprep.subr.mxu0 0.0
  %681 = vmatpush1.msra.mxu0 0.0
  %682 = vmatprep.subr.mxu0 0.0
  %683 = vmatpush1.msra.mxu0 0.0
  %684 = vmatprep.subr.mxu0 0.0
  %685 = vmatpush1.msra.mxu0 0.0
  %686 = vmatprep.subr.mxu0 0.0
  %687 = vmatpush1.msra.mxu0 0.0
  %688 = vmatprep.subr.mxu0 0.0
  %689 = vmatpush1.msra.mxu0 0.0
  %690 = vmatprep.subr.mxu0 0.0
  %691 = vmatpush1.msra.mxu0 0.0
  %692 = vmatprep.subr.mxu0 0.0
  %693 = vmatpush1.msra.mxu0 0.0
  %694 = vmatprep.subr.mxu0 0.0
  %695 = vmatpush1.msra.mxu0 0.0
  %696 = vmatprep.subr.mxu0 0.0
  %697 = vmatpush1.msra.mxu0 0.0
  %698 = vmatprep.mubr.f32.mxu0 0.0
  %699 = vmatmul.mubr.f32.gmra.mrb[0].mxu0 %v630
  %v700 = vpop.f32.mrb[0].mxu0
  %v701 = vadd.f32 0.0, %v700
  %v702 = vpop.f32.mrb[0].mxu0
  %703 = vdwg.mxu0
  %v704 = vadd.f32 %v633, %v701
  %v705 = vtanh.pop %v704
  %v706 = vadd.f32 %v631, %v705
  %s707 = scalar_lea.vmem [#allocation2], 56
  %v708 = vld [vmem:[%s707] sm:$0xff]
  %709 = vmatprep.subr.mxu0 0.0
  %710 = vmatpush1.msra.mxu0 %v167
  %711 = vmatprep.subr.mxu0 0.0
  %712 = vmatpush1.msra.mxu0 %v168
  %713 = vmatprep.subr.mxu0 0.0
  %714 = vmatpush1.msra.mxu0 %v169
  %715 = vmatprep.subr.mxu0 0.0
  %716 = vmatpush1.msra.mxu0 %v170
  %717 = vmatprep.subr.mxu0 0.0
  %718 = vmatpush1.msra.mxu0 %v171
  %719 = vmatprep.subr.mxu0 0.0
  %720 = vmatpush1.msra.mxu0 %v172
  %721 = vmatprep.subr.mxu0 0.0
  %722 = vmatpush1.msra.mxu0 %v173
  %723 = vmatprep.subr.mxu0 0.0
  %724 = vmatpush1.msra.mxu0 %v174
  %725 = vmatprep.subr.mxu0 0.0
  %726 = vmatpush1.msra.mxu0 %v175
  %727 = vmatprep.subr.mxu0 0.0
  %728 = vmatpush1.msra.mxu0 %v176
  %729 = vmatprep.subr.mxu0 0.0
  %730 = vmatpush1.msra.mxu0 %v177
  %731 = vmatprep.subr.mxu0 0.0
  %732 = vmatpush1.msra.mxu0 %v178
  %733 = vmatprep.subr.mxu0 0.0
  %734 = vmatpush1.msra.mxu0 %v179
  %735 = vmatprep.subr.mxu0 0.0
  %736 = vmatpush1.msra.mxu0 %v180
  %737 = vmatprep.subr.mxu0 0.0
  %738 = vmatpush1.msra.mxu0 %v181
  %739 = vmatprep.subr.mxu0 0.0
  %740 = vmatpush1.msra.mxu0 %v182
  %741 = vmatprep.subr.mxu0 0.0
  %742 = vmatpush1.msra.mxu0 0.0
  %743 = vmatprep.subr.mxu0 0.0
  %744 = vmatpush1.msra.mxu0 0.0
  %745 = vmatprep.subr.mxu0 0.0
  %746 = vmatpush1.msra.mxu0 0.0
  %747 = vmatprep.subr.mxu0 0.0
  %748 = vmatpush1.msra.mxu0 0.0
  %749 = vmatprep.subr.mxu0 0.0
  %750 = vmatpush1.msra.mxu0 0.0
  %751 = vmatprep.subr.mxu0 0.0
  %752 = vmatpush1.msra.mxu0 0.0
  %753 = vmatprep.subr.mxu0 0.0
  %754 = vmatpush1.msra.mxu0 0.0
  %755 = vmatprep.subr.mxu0 0.0
  %756 = vmatpush1.msra.mxu0 0.0
  %757 = vmatprep.subr.mxu0 0.0
  %758 = vmatpush1.msra.mxu0 0.0
  %759 = vmatprep.subr.mxu0 0.0
  %760 = vmatpush1.msra.mxu0 0.0
  %761 = vmatprep.subr.mxu0 0.0
  %762 = vmatpush1.msra.mxu0 0.0
  %763 = vmatprep.subr.mxu0 0.0
  %764 = vmatpush1.msra.mxu0 0.0
  %765 = vmatprep.subr.mxu0 0.0
  %766 = vmatpush1.msra.mxu0 0.0
  %767 = vmatprep.subr.mxu0 0.0
  %768 = vmatpush1.msra.mxu0 0.0
  %769 = vmatprep.subr.mxu0 0.0
  %770 = vmatpush1.msra.mxu0 0.0
  %771 = vmatprep.subr.mxu0 0.0
  %772 = vmatpush1.msra.mxu0 0.0
  %773 = vmatprep.mubr.f32.mxu0 0.0
  %774 = vmatmul.mubr.f32.gmra.mrb[0].mxu0 %v705
  %v775 = vpop.f32.mrb[0].mxu0
  %v776 = vadd.f32 0.0, %v775
  %v777 = vpop.f32.mrb[0].mxu0
  %778 = vdwg.mxu0
  %v779 = vadd.f32 %v708, %v776
  %v780 = vtanh.pop %v779
  %v781 = vadd.f32 %v706, %v780
  %v782 = vmul.f32 %v781, 0.125
  %v783 = vld [vmem:[%s4] sm:$0xff]
  %v784 = vld [vmem:[%s4 + $0x8] sm:$0xff]
  %v785 = vld [vmem:[%s4 + $0x10] sm:$0xff]
  %v786 = vld [vmem:[%s4 + $0x18] sm:$0xff]
  %v787 = vld [vmem:[%s4 + $0x20] sm:$0xff]
  %v788 = vld [vmem:[%s4 + $0x28] sm:$0xff]
  %v789 = vld [vmem:[%s4 + $0x30] sm:$0xff]
  %v790 = vld [vmem:[%s4 + $0x38] sm:$0xff]
  %v791 = vld [vmem:[%s4 + $0x40] sm:$0xff]
  %v792 = vld [vmem:[%s4 + $0x48] sm:$0xff]
  %v793 = vld [vmem:[%s4 + $0x50] sm:$0xff]
  %v794 = vld [vmem:[%s4 + $0x58] sm:$0xff]
  %v795 = vld [vmem:[%s4 + $0x60] sm:$0xff]
  %v796 = vld [vmem:[%s4 + $0x68] sm:$0xff]
  %v797 = vld [vmem:[%s4 + $0x70] sm:$0xff]
  %v798 = vld [vmem:[%s4 + $0x78] sm:$0xff]
  %v799 = vld [vmem:[%s5] sm:$0x1]
  %v801 = vlaneseq
  %v802 = vshrl.u32 %v801, 7
  %v803 = vsub.s32 0, %v802
  %v804 = vrot.slane %v799, %v803
  %806 = vmatprep.subr.mxu0 0.0
  %807 = vmatpush1.msra.mxu0 %v783
  %808 = vmatprep.subr.mxu0 0.0
  %809 = vmatpush1.msra.mxu0 %v784
  %810 = vmatprep.subr.mxu0 0.0
  %811 = vmatpush1.msra.mxu0 %v785
  %812 = vmatprep.subr.mxu0 0.0
  %813 = vmatpush1.msra.mxu0 %v786
  %814 = vmatprep.subr.mxu0 0.0
  %815 = vmatpush1.msra.mxu0 %v787
  %816 = vmatprep.subr.mxu0 0.0
  %817 = vmatpush1.msra.mxu0 %v788
  %818 = vmatprep.subr.mxu0 0.0
  %819 = vmatpush1.msra.mxu0 %v789
  %820 = vmatprep.subr.mxu0 0.0
  %821 = vmatpush1.msra.mxu0 %v790
  %822 = vmatprep.subr.mxu0 0.0
  %823 = vmatpush1.msra.mxu0 %v791
  %824 = vmatprep.subr.mxu0 0.0
  %825 = vmatpush1.msra.mxu0 %v792
  %826 = vmatprep.subr.mxu0 0.0
  %827 = vmatpush1.msra.mxu0 %v793
  %828 = vmatprep.subr.mxu0 0.0
  %829 = vmatpush1.msra.mxu0 %v794
  %830 = vmatprep.subr.mxu0 0.0
  %831 = vmatpush1.msra.mxu0 %v795
  %832 = vmatprep.subr.mxu0 0.0
  %833 = vmatpush1.msra.mxu0 %v796
  %834 = vmatprep.subr.mxu0 0.0
  %835 = vmatpush1.msra.mxu0 %v797
  %836 = vmatprep.subr.mxu0 0.0
  %837 = vmatpush1.msra.mxu0 %v798
  %838 = vmatprep.subr.mxu0 0.0
  %839 = vmatpush1.msra.mxu0 0.0
  %840 = vmatprep.subr.mxu0 0.0
  %841 = vmatpush1.msra.mxu0 0.0
  %842 = vmatprep.subr.mxu0 0.0
  %843 = vmatpush1.msra.mxu0 0.0
  %844 = vmatprep.subr.mxu0 0.0
  %845 = vmatpush1.msra.mxu0 0.0
  %846 = vmatprep.subr.mxu0 0.0
  %847 = vmatpush1.msra.mxu0 0.0
  %848 = vmatprep.subr.mxu0 0.0
  %849 = vmatpush1.msra.mxu0 0.0
  %850 = vmatprep.subr.mxu0 0.0
  %851 = vmatpush1.msra.mxu0 0.0
  %852 = vmatprep.subr.mxu0 0.0
  %853 = vmatpush1.msra.mxu0 0.0
  %854 = vmatprep.subr.mxu0 0.0
  %855 = vmatpush1.msra.mxu0 0.0
  %856 = vmatprep.subr.mxu0 0.0
  %857 = vmatpush1.msra.mxu0 0.0
  %858 = vmatprep.subr.mxu0 0.0
  %859 = vmatpush1.msra.mxu0 0.0
  %860 = vmatprep.subr.mxu0 0.0
  %861 = vmatpush1.msra.mxu0 0.0
  %862 = vmatprep.subr.mxu0 0.0
  %863 = vmatpush1.msra.mxu0 0.0
  %864 = vmatprep.subr.mxu0 0.0
  %865 = vmatpush1.msra.mxu0 0.0
  %866 = vmatprep.subr.mxu0 0.0
  %867 = vmatpush1.msra.mxu0 0.0
  %868 = vmatprep.subr.mxu0 0.0
  %869 = vmatpush1.msra.mxu0 0.0
  %870 = vmatprep.mubr.f32.mxu0 0.0
  %871 = vmatmul.mubr.f32.gmra.mrb[0].mxu0 %v782
  %v872 = vpop.f32.mrb[0].mxu0
  %v873 = vadd.f32 %v804, %v872
  %v874 = vpop.f32.mrb[0].mxu0
  %875 = vdwg.mxu0
  %876 = vst [vmem:[%s6] sm:$0xff] %v873
  // Predicated region
  $region26: #{rnn_forward.1} parent=0 // pred_check
    _
  $region27: #{rnn_forward.1} parent=0 // pred_check_branch
    %878 = sbr.rel (0) target = $region29
  $region28: #{rnn_forward.1} parent=0 // pred_region
    _
  $region29: #{rnn_forward.1} parent=0 // pred_fallthru
    _
  // Predicated region
  $region30: #{rnn_forward.1} parent=0 // pred_check
    _
  $region31: #{rnn_forward.1} parent=0 // pred_check_branch
    %880 = sbr.rel (0) target = $region33
  $region32: #{rnn_forward.1} parent=0 // pred_region
    _
  $region33: #{rnn_forward.1} parent=0 // pred_fallthru
    _

</llo_original>
